<compile_context>
chip_gen: v6e
topology: v6e:2x2x1
jax: 0.10.0
libtpu: 0.0.40
codegen_flags: <defaults>
</compile_context>

<pallas_src>
import jax
import jax.numpy as jnp
from jax.experimental import pallas as pl
from jax.experimental.pallas import tpu as pltpu

IN_FEATURES = 256 * 4          # 1024
HIDDEN = 128
OUT_FEATURES = 1
TILE_B_MAX = 2048              # no-weight path: x-only stream
TILE_B_MAX_WEIGHTED = 1024     # weighted path streams x + weight (2x bytes)
VMEM_LIMIT_BYTES = 40 * 1024 * 1024  # > scoped defaults, < 64 MiB v7x physical


def _cdiv(a, b):
    return -(-a // b)


def _round_up(n, m):
    return ((n + m - 1) // m) * m


def _predictor_kernel(x_ref, w1_ref, b1_ref, w2_ref, b2_ref, out_ref):
    # Linear(1024 -> 128) + ReLU.  bf16 operands on the MXU, f32 accumulate.
    x = x_ref[...].astype(jnp.bfloat16)
    h = jnp.dot(x, w1_ref[...], preferred_element_type=jnp.float32)
    h = jnp.maximum(h + b1_ref[...], 0.0)
    # TODO(synk): nn.Dropout() is identity here (eval mode); training-mode
    # dropout would use pltpu.prng_seed / pltpu.prng_random_bits.
    # Linear(128 -> 1): VPU multiply + lane reduction (avoids N=1 MXU matmul).
    logit = jnp.sum(h * w2_ref[...], axis=-1, keepdims=True) + b2_ref[0, 0]
    out_ref[...] = jax.nn.sigmoid(logit)


def _predictor_kernel_w(x_ref, ew_ref, w1_ref, b1_ref, w2_ref, b2_ref, out_ref):
    # Optional element-wise weighting (torch.mul(x, weight.detach())) in f32,
    # then cast to bf16 for the MXU.
    x = (x_ref[...] * ew_ref[...]).astype(jnp.bfloat16)
    h = jnp.dot(x, w1_ref[...], preferred_element_type=jnp.float32)
    h = jnp.maximum(h + b1_ref[...], 0.0)
    # TODO(synk): nn.Dropout() is identity here (eval mode).
    logit = jnp.sum(h * w2_ref[...], axis=-1, keepdims=True) + b2_ref[0, 0]
    out_ref[...] = jax.nn.sigmoid(logit)


def _choose_tile_b(B, with_weight, tile_b_max=None):
    if tile_b_max is None:
        tile_b_max = TILE_B_MAX_WEIGHTED if with_weight else TILE_B_MAX
    if B <= 16:
        # Single block equal to the full batch dim (always layout-legal).
        return B
    # Balanced tiles (caps padding waste at <16 rows/tile) and >=2 grid steps
    # so the batch axis can shard across TensorCores / overlap DMA+compute.
    n_tiles = max(_cdiv(B, tile_b_max), 2)
    return _round_up(_cdiv(B, n_tiles), 16)


def _build_call(B, tile_b, with_weight, x_itemsize):
    grid = (_cdiv(B, tile_b),)   # ragged last block; OOB rows masked on write

    x_spec = pl.BlockSpec((tile_b, IN_FEATURES), lambda i: (i, 0))
    w1_spec = pl.BlockSpec((IN_FEATURES, HIDDEN), lambda i: (0, 0))   # resident
    b1_spec = pl.BlockSpec((1, HIDDEN), lambda i: (0, 0))             # resident
    w2_spec = pl.BlockSpec((1, HIDDEN), lambda i: (0, 0))             # resident
    b2_spec = pl.BlockSpec(memory_space=pltpu.MemorySpace.SMEM)       # scalar
    out_spec = pl.BlockSpec((tile_b, OUT_FEATURES), lambda i: (i, 0))

    in_specs = [x_spec]
    if with_weight:
        in_specs.append(pl.BlockSpec((tile_b, IN_FEATURES), lambda i: (i, 0)))
    in_specs += [w1_spec, b1_spec, w2_spec, b2_spec]

    x_bytes = B * IN_FEATURES * x_itemsize * (2 if with_weight else 1)
    param_bytes = IN_FEATURES * HIDDEN * 2 + (HIDDEN + HIDDEN + 1) * 4
    out_bytes = B * OUT_FEATURES * 4
    cost = pl.CostEstimate(
        flops=2 * B * IN_FEATURES * HIDDEN + 4 * B * HIDDEN,
        transcendentals=B,
        bytes_accessed=x_bytes + param_bytes + out_bytes,
    )

    return pl.pallas_call(
        _predictor_kernel_w if with_weight else _predictor_kernel,
        out_shape=jax.ShapeDtypeStruct((B, OUT_FEATURES), jnp.float32),
        grid=grid,
        in_specs=in_specs,
        out_specs=out_spec,
        compiler_params=pltpu.CompilerParams(
            dimension_semantics=("parallel",),
            vmem_limit_bytes=VMEM_LIMIT_BYTES),
        cost_estimate=cost,
    )


def predictor_forward(x, params, weight=None, tile_b_max=None):
    """x: (B, 1024) f32/bf16; weight: optional (B, 1024) elementwise multiplier."""
    B = x.shape[0]
    w1, b1, w2, b2 = params  # (1024,128), (1,128), (128,1), (1,1)
    with_weight = weight is not None

    w1_bf = w1.astype(jnp.bfloat16)                           # bf16 MXU operand
    b1_row = jnp.reshape(b1, (1, HIDDEN)).astype(jnp.float32)
    w2_row = jnp.reshape(w2, (1, HIDDEN)).astype(jnp.float32)  # lane-major row
    b2_s = jnp.reshape(b2, (1, 1)).astype(jnp.float32)

    tile_b = _choose_tile_b(B, with_weight, tile_b_max)
    call = _build_call(B, tile_b, with_weight, jnp.dtype(x.dtype).itemsize)
    if with_weight:
        return call(x, weight, w1_bf, b1_row, w2_row, b2_s)
    return call(x, w1_bf, b1_row, w2_row, b2_s)


def init_params(key):
    """Deterministic init mimicking nn.Linear default (uniform +/- 1/sqrt(fan_in))."""
    k1, k2, k3, k4 = jax.random.split(key, 4)
    bound1 = 1.0 / (IN_FEATURES ** 0.5)
    bound2 = 1.0 / (HIDDEN ** 0.5)
    w1 = jax.random.uniform(k1, (IN_FEATURES, HIDDEN), jnp.float32, -bound1, bound1)
    b1 = jax.random.uniform(k2, (1, HIDDEN), jnp.float32, -bound1, bound1)
    w2 = jax.random.uniform(k3, (HIDDEN, OUT_FEATURES), jnp.float32, -bound2, bound2)
    b2 = jax.random.uniform(k4, (1, OUT_FEATURES), jnp.float32, -bound2, bound2)
    return (w1, b1, w2, b2)


def reference_forward(x, params, weight=None):
    w1, b1, w2, b2 = params
    if weight is not None:
        x = x * weight
    h = jnp.maximum(x @ w1 + b1, 0.0)
    return jax.nn.sigmoid(h @ w2 + b2)


if __name__ == "__main__":
    key = jax.random.PRNGKey(0)
    kx, kw, kp, kx2, kx3 = jax.random.split(key, 5)

    params = init_params(kp)
    # bf16 first-layer matmul -> looser tolerance than the old f32 path.
    TOL = 5e-3

    # Case 1: small sublane-aligned batch, with elementwise weight.
    B = 8
    x = jax.random.normal(kx, (B, IN_FEATURES), jnp.float32)
    elem_weight = jax.random.uniform(kw, (B, IN_FEATURES), jnp.float32)
    out = jax.block_until_ready(predictor_forward(x, params, weight=elem_weight))
    ref = reference_forward(x, params, weight=elem_weight)
    assert out.shape == (B, 1)
    assert jnp.allclose(out, ref, atol=TOL), "mismatch vs reference (weighted)"

    # Case 2: weight=None path (no ones tensor materialized or DMA'd).
    out_nw = jax.block_until_ready(predictor_forward(x, params))
    ref_nw = reference_forward(x, params)
    assert jnp.allclose(out_nw, ref_nw, atol=TOL), "mismatch vs reference (no weight)"

    # Case 3: multi-step grid with a ragged last block (no jnp.pad anywhere).
    B2 = 40
    x2 = jax.random.normal(kx2, (B2, IN_FEATURES), jnp.float32)
    out2 = jax.block_until_ready(predictor_forward(x2, params, tile_b_max=16))
    ref2 = reference_forward(x2, params)
    assert out2.shape == (B2, 1)
    assert jnp.allclose(out2, ref2, atol=TOL), "mismatch vs reference (tiled ragged)"

    # Case 4: batch not a multiple of 8, default tile selection, weighted.
    B3 = 21
    x3 = jax.random.normal(kx3, (B3, IN_FEATURES), jnp.float32)
    w3 = jax.random.uniform(kw, (B3, IN_FEATURES), jnp.float32)
    out3 = jax.block_until_ready(predictor_forward(x3, params, weight=w3))
    ref3 = reference_forward(x3, params, weight=w3)
    assert out3.shape == (B3, 1)
    assert jnp.allclose(out3, ref3, atol=TOL), "mismatch vs reference (unaligned B)"

    print("KERNEL_OK")
</pallas_src>

<mosaic_0001>
module attributes {stable_mosaic.version = 11 : i64} {
  func.func @_predictor_kernel_w(%arg0: i32, %arg1: memref<8x1024xf32, #tpu.memory_space<vmem>>, %arg2: memref<8x1024xf32, #tpu.memory_space<vmem>>, %arg3: memref<1024x128xbf16, #tpu.memory_space<vmem>>, %arg4: memref<1x128xf32, #tpu.memory_space<vmem>>, %arg5: memref<1x128xf32, #tpu.memory_space<vmem>>, %arg6: memref<1x1xf32, #tpu.memory_space<smem>>, %arg7: memref<8x1xf32, #tpu.memory_space<vmem>>) attributes {dimension_semantics = [#tpu.dimension_semantics<parallel>], iteration_bounds = array<i64: 1>, scalar_prefetch = 0 : i64, scratch_operands = 0 : i64, tpu.core_type = #tpu.core_type<tc>, window_params = [{transform_indices = @transform_0, window_bounds = array<i64: 8, 1024>}, {transform_indices = @transform_1, window_bounds = array<i64: 8, 1024>}, {pipeline_mode = #tpu.pipeline_mode<synchronous>, transform_indices = @transform_2, window_bounds = array<i64: 1024, 128>}, {pipeline_mode = #tpu.pipeline_mode<synchronous>, transform_indices = @transform_3, window_bounds = array<i64: 1, 128>}, {pipeline_mode = #tpu.pipeline_mode<synchronous>, transform_indices = @transform_4, window_bounds = array<i64: 1, 128>}, {transform_indices = @transform_5, window_bounds = array<i64: 1, 1>}, {transform_indices = @transform_6, window_bounds = array<i64: 8, 1>}]} {
    %c0 = arith.constant 0 : index
    %c0_0 = arith.constant 0 : index
    %0 = vector.load %arg1[%c0, %c0_0] : memref<8x1024xf32, #tpu.memory_space<vmem>>, vector<8x1024xf32>
    %c0_1 = arith.constant 0 : index
    %c0_2 = arith.constant 0 : index
    %1 = vector.load %arg2[%c0_1, %c0_2] : memref<8x1024xf32, #tpu.memory_space<vmem>>, vector<8x1024xf32>
    %2 = arith.mulf %0, %1 : vector<8x1024xf32>
    %3 = arith.truncf %2 : vector<8x1024xf32> to vector<8x1024xbf16>
    %c0_3 = arith.constant 0 : index
    %c0_4 = arith.constant 0 : index
    %4 = vector.load %arg3[%c0_3, %c0_4] : memref<1024x128xbf16, #tpu.memory_space<vmem>>, vector<1024x128xbf16>
    %cst = arith.constant dense<0.000000e+00> : vector<8x128xf32>
    %5 = tpu.matmul %3, %4, %cst {dimension_numbers = #tpu.dot_dimension_numbers<[1], [0], [0], [1], [0, 0, 1, 1], [], []>} : vector<8x1024xbf16>, vector<1024x128xbf16>, vector<8x128xf32> -> vector<8x128xf32>
    %c0_5 = arith.constant 0 : index
    %c0_6 = arith.constant 0 : index
    %6 = vector.load %arg4[%c0_5, %c0_6] : memref<1x128xf32, #tpu.memory_space<vmem>>, vector<1x128xf32>
    %7 = vector.broadcast %6 : vector<1x128xf32> to vector<8x128xf32>
    %8 = arith.addf %5, %7 : vector<8x128xf32>
    %cst_7 = arith.constant 0.000000e+00 : f32
    %9 = vector.broadcast %cst_7 : f32 to vector<8x128xf32>
    %10 = arith.maximumf %8, %9 : vector<8x128xf32>
    %c0_8 = arith.constant 0 : index
    %c0_9 = arith.constant 0 : index
    %11 = vector.load %arg5[%c0_8, %c0_9] : memref<1x128xf32, #tpu.memory_space<vmem>>, vector<1x128xf32>
    %12 = vector.broadcast %11 : vector<1x128xf32> to vector<8x128xf32>
    %13 = arith.mulf %10, %12 : vector<8x128xf32>
    %cst_10 = arith.constant dense<0.000000e+00> : vector<8xf32>
    %14 = vector.multi_reduction <add>, %13, %cst_10 [1] : vector<8x128xf32> to vector<8xf32>
    %15 = vector.shape_cast %14 : vector<8xf32> to vector<8x1xf32>
    %c0_11 = arith.constant 0 : index
    %c0_12 = arith.constant 0 : index
    %16 = memref.load %arg6[%c0_11, %c0_12] : memref<1x1xf32, #tpu.memory_space<smem>>
    %17 = vector.broadcast %16 : f32 to vector<8x1xf32>
    %18 = arith.addf %15, %17 : vector<8x1xf32>
    %19 = arith.negf %18 : vector<8x1xf32>
    %20 = math.exp %19 : vector<8x1xf32>
    %cst_13 = arith.constant 1.000000e+00 : f32
    %21 = vector.broadcast %cst_13 : f32 to vector<8x1xf32>
    %22 = arith.addf %21, %20 : vector<8x1xf32>
    %23 = arith.divf %21, %22 : vector<8x1xf32>
    %c0_14 = arith.constant 0 : index
    %c0_15 = arith.constant 0 : index
    %24 = vector.load %arg7[%c0_14, %c0_15] : memref<8x1xf32, #tpu.memory_space<vmem>>, vector<8x1xf32>
    tpu.vector_store %arg7[%c0_14, %c0_15], %23 {strides = array<i32>} : memref<8x1xf32, #tpu.memory_space<vmem>>, vector<8x1xf32>,
    return
  }
  func.func @transform_0(%arg0: i32) -> (i32, i32) {
    %c0_i32 = arith.constant 0 : i32
    %c0_i32_0 = arith.constant 0 : i32
    return %arg0, %c0_i32 : i32, i32
  }
  func.func @transform_1(%arg0: i32) -> (i32, i32) {
    %c0_i32 = arith.constant 0 : i32
    %c0_i32_0 = arith.constant 0 : i32
    return %arg0, %c0_i32 : i32, i32
  }
  func.func @transform_2(%arg0: i32) -> (i32, i32) {
    %c0_i32 = arith.constant 0 : i32
    %c0_i32_0 = arith.constant 0 : i32
    %c0_i32_1 = arith.constant 0 : i32
    return %c0_i32, %c0_i32_0 : i32, i32
  }
  func.func @transform_3(%arg0: i32) -> (i32, i32) {
    %c0_i32 = arith.constant 0 : i32
    %c0_i32_0 = arith.constant 0 : i32
    %c0_i32_1 = arith.constant 0 : i32
    return %c0_i32, %c0_i32_0 : i32, i32
  }
  func.func @transform_4(%arg0: i32) -> (i32, i32) {
    %c0_i32 = arith.constant 0 : i32
    %c0_i32_0 = arith.constant 0 : i32
    %c0_i32_1 = arith.constant 0 : i32
    return %c0_i32, %c0_i32_0 : i32, i32
  }
  func.func @transform_5(%arg0: i32) -> (i32, i32) {
    %c0_i32 = arith.constant 0 : i32
    %c0_i32_0 = arith.constant 0 : i32
    %c0_i32_1 = arith.constant 0 : i32
    return %c0_i32, %c0_i32_0 : i32, i32
  }
  func.func @transform_6(%arg0: i32) -> (i32, i32) {
    %c0_i32 = arith.constant 0 : i32
    %c0_i32_0 = arith.constant 0 : i32
    return %arg0, %c0_i32 : i32, i32
  }
}

</mosaic_0001>

<llo_original>
// kernel: tpu_custom_call.1
$region0: #{tpu_custom_call.1}
  #allocation0 [shape = 'u32[]', space=smem, size = 0x4, offset = 0x4, fixed_abs, tag = 'smem constant byte address 0x4 - core index']
  #allocation1 [shape = 'u32[144,128]{1,0:T(1,128)}', space=vmem, size = 0x12000, scoped, tag = 'internal scratch']
  #allocation2 [shape = 'f32[1,1]{1,0:T(1,128)S(6)}', space=smem, size = 0x200, scoped, tag = 'scoped memory for tpu_custom_call.1']
  %s0 = inlined_call_operand.hbm [shape: f32[8,1024], index: 0, kind: input, shape index: {}]
  %s1 = inlined_call_operand.hbm [shape: f32[8,1024], index: 1, kind: input, shape index: {}]
  %s2 = inlined_call_operand.hbm [shape: bf16[1024,128], index: 2, kind: input, shape index: {}]
  %s3 = inlined_call_operand.vmem [shape: f32[1,128], index: 3, kind: input, shape index: {}]
  %s4 = inlined_call_operand.vmem [shape: f32[1,128], index: 4, kind: input, shape index: {}]
  %s5 = inlined_call_operand.<no memory space> [shape: f32[1,1], index: 5, kind: input, shape index: {}]
  %s6 = inlined_call_operand.vmem [shape: f32[8,1], index: 6, kind: output, shape index: {}]
  %s7 = sld [smem:[#allocation0]]
  $region46: #{tpu_custom_call.1} parent=0
    _
  %s9 = ssub.s32 1, %s7
  %s10 = scalar_select 0, %s9, %s7
  %11 = sst [smem:[#allocation2]] %s5
  $region1: #{tpu_custom_call.1} parent=0
    #allocation3 [shape = 'u8[32768]{0}', space=vmem, size = 0x8000, scoped, tag = 'input window, operand 0, single buffered']
    #allocation4 [shape = 's32[1]{0}', space=sflag, size = 0x4, scoped, tag = 'scoped memory for tpu_custom_call.1']
    #allocation5 [shape = 'u8[32768]{0}', space=vmem, size = 0x8000, scoped, tag = 'input window, operand 1, single buffered']
    #allocation6 [shape = 's32[1]{0}', space=sflag, size = 0x4, scoped, tag = 'scoped memory for tpu_custom_call.1']
    #allocation7 [shape = 'u8[262144]{0}', space=vmem, size = 0x40000, scoped, tag = 'input window, operand 2, single buffered']
    %12 = vsyncpa [#allocation4], 0
    %13 = vsyncpa [#allocation6], 0
    // Predicated region
    $region2: #{tpu_custom_call.1} parent=1 // pred_check
      _
    $region3: #{tpu_custom_call.1} parent=1 // pred_check_branch
      %15 = sbr.rel (0) target = $region5
    $region4: #{tpu_custom_call.1} parent=1 // pred_region
      %s17 = ssub.s32 1024, 1024
      %18 = vsyncadd [#allocation4], %s17
      %s20 = sshll.u32 [#allocation3], 4
      %s21 = int_to_ptr.vmem [resolvable:$true] %s20
      %23 = dma.hbm_to_vmem [thread:$0]  %s0, 1024, %s21, [#allocation4]
    $region5: #{tpu_custom_call.1} parent=1 // pred_fallthru
      _
    // Predicated region
    $region6: #{tpu_custom_call.1} parent=1 // pred_check
      _
    $region7: #{tpu_custom_call.1} parent=1 // pred_check_branch
      %25 = sbr.rel (0) target = $region9
    $region8: #{tpu_custom_call.1} parent=1 // pred_region
      %s27 = ssub.s32 1024, 1024
      %28 = vsyncadd [#allocation6], %s27
      %s30 = sshll.u32 [#allocation5], 4
      %s31 = int_to_ptr.vmem [resolvable:$true] %s30
      %33 = dma.hbm_to_vmem [thread:$0]  %s1, 1024, %s31, [#allocation6]
    $region9: #{tpu_custom_call.1} parent=1 // pred_fallthru
      _
    // Predicated region
    $region10: #{tpu_custom_call.1} parent=1 // pred_check
      _
    $region11: #{tpu_custom_call.1} parent=1 // pred_check_branch
      %35 = sbr.rel (0) target = $region13
    $region12: #{tpu_custom_call.1} parent=1 // pred_region
      %s37 = ssub.s32 8192, 8192
      %38 = vsyncadd [#allocation6], %s37
      %s39 = sshll.u32 [#allocation7], 4
      %s40 = int_to_ptr.vmem [resolvable:$true] %s39
      %45 = dma.hbm_to_vmem [thread:$0]  %s2, 8192, %s40, [#allocation6], 64, 64, 4
    $region13: #{tpu_custom_call.1} parent=1 // pred_fallthru
      _
    // Predicated region
    $region14: #{tpu_custom_call.1} parent=1 // pred_check
      _
    $region15: #{tpu_custom_call.1} parent=1 // pred_check_branch
      %47 = sbr.rel (0) target = $region17
    $region16: #{tpu_custom_call.1} parent=1 // pred_region
      _
    $region17: #{tpu_custom_call.1} parent=1 // pred_fallthru
      _
    // Predicated region
    $region18: #{tpu_custom_call.1} parent=1 // pred_check
      _
    $region19: #{tpu_custom_call.1} parent=1 // pred_check_branch
      %49 = sbr.rel (0) target = $region21
    $region20: #{tpu_custom_call.1} parent=1 // pred_region
      _
    $region21: #{tpu_custom_call.1} parent=1 // pred_fallthru
      _
    // Predicated region
    $region22: #{tpu_custom_call.1} parent=1 // pred_check
      _
    $region23: #{tpu_custom_call.1} parent=1 // pred_check_branch
      %51 = sbr.rel (0) target = $region25
    $region24: #{tpu_custom_call.1} parent=1 // pred_region
      _
    $region25: #{tpu_custom_call.1} parent=1 // pred_fallthru
      _
    // Predicated region
    $region26: #{tpu_custom_call.1} parent=1 // pred_check
      _
    $region27: #{tpu_custom_call.1} parent=1 // pred_check_branch
      %53 = sbr.rel (0) target = $region29
    $region28: #{tpu_custom_call.1} parent=1 // pred_region
      %54 = dma.done [#allocation4], 1024
    $region29: #{tpu_custom_call.1} parent=1 // pred_fallthru
      _
    // Predicated region
    $region30: #{tpu_custom_call.1} parent=1 // pred_check
      _
    $region31: #{tpu_custom_call.1} parent=1 // pred_check_branch
      %56 = sbr.rel (0) target = $region33
    $region32: #{tpu_custom_call.1} parent=1 // pred_region
      %57 = dma.done [#allocation6], 1024
    $region33: #{tpu_custom_call.1} parent=1 // pred_fallthru
      _
    // Predicated region
    $region34: #{tpu_custom_call.1} parent=1 // pred_check
      _
    $region35: #{tpu_custom_call.1} parent=1 // pred_check_branch
      %59 = sbr.rel (0) target = $region37
    $region36: #{tpu_custom_call.1} parent=1 // pred_region
      %60 = dma.done [#allocation6], 8192
    $region37: #{tpu_custom_call.1} parent=1 // pred_fallthru
      _
    %v62 = vld [vmem:[#allocation3] sm:$0xff]
    %v63 = vld [vmem:[#allocation3 + $0x8] sm:$0xff]
    %v64 = vld [vmem:[#allocation3 + $0x10] sm:$0xff]
    %v65 = vld [vmem:[#allocation3 + $0x18] sm:$0xff]
    %v66 = vld [vmem:[#allocation3 + $0x20] sm:$0xff]
    %v67 = vld [vmem:[#allocation3 + $0x28] sm:$0xff]
    %v68 = vld [vmem:[#allocation3 + $0x30] sm:$0xff]
    %v69 = vld [vmem:[#allocation3 + $0x38] sm:$0xff]
    %v70 = vld [vmem:[#allocation5] sm:$0xff]
    %v71 = vld [vmem:[#allocation5 + $0x8] sm:$0xff]
    %v72 = vld [vmem:[#allocation5 + $0x10] sm:$0xff]
    %v73 = vld [vmem:[#allocation5 + $0x18] sm:$0xff]
    %v74 = vld [vmem:[#allocation5 + $0x20] sm:$0xff]
    %v75 = vld [vmem:[#allocation5 + $0x28] sm:$0xff]
    %v76 = vld [vmem:[#allocation5 + $0x30] sm:$0xff]
    %v77 = vld [vmem:[#allocation5 + $0x38] sm:$0xff]
    %v78 = vmul.f32 %v62, %v70
    %v79 = vmul.f32 %v63, %v71
    %v80 = vmul.f32 %v64, %v72
    %v81 = vmul.f32 %v65, %v73
    %v82 = vmul.f32 %v66, %v74
    %v83 = vmul.f32 %v67, %v75
    %v84 = vmul.f32 %v68, %v76
    %v85 = vmul.f32 %v69, %v77
    %v86 = vpack.c.bf16 %v78, %v78
    %v87 = vpack.c.bf16 %v79, %v79
    %v88 = vpack.c.bf16 %v80, %v80
    %v89 = vpack.c.bf16 %v81, %v81
    %v90 = vpack.c.bf16 %v82, %v82
    %v91 = vpack.c.bf16 %v83, %v83
    %v92 = vpack.c.bf16 %v84, %v84
    %v93 = vpack.c.bf16 %v85, %v85
    %v94 = vld [vmem:[#allocation7] sm:$0xf]
    %v95 = vld [vmem:[#allocation7 + $0x4] sm:$0xf]
    %v96 = vld [vmem:[#allocation7 + $0x8] sm:$0xf]
    %v97 = vld [vmem:[#allocation7 + $0xc] sm:$0xf]
    %v98 = vld [vmem:[#allocation7 + $0x10] sm:$0xf]
    %v99 = vld [vmem:[#allocation7 + $0x14] sm:$0xf]
    %v100 = vld [vmem:[#allocation7 + $0x18] sm:$0xf]
    %v101 = vld [vmem:[#allocation7 + $0x1c] sm:$0xf]
    %v102 = vld [vmem:[#allocation7 + $0x20] sm:$0xf]
    %v103 = vld [vmem:[#allocation7 + $0x24] sm:$0xf]
    %v104 = vld [vmem:[#allocation7 + $0x28] sm:$0xf]
    %v105 = vld [vmem:[#allocation7 + $0x2c] sm:$0xf]
    %v106 = vld [vmem:[#allocation7 + $0x30] sm:$0xf]
    %v107 = vld [vmem:[#allocation7 + $0x34] sm:$0xf]
    %v108 = vld [vmem:[#allocation7 + $0x38] sm:$0xf]
    %v109 = vld [vmem:[#allocation7 + $0x3c] sm:$0xf]
    %v110 = vld [vmem:[#allocation7 + $0x40] sm:$0xf]
    %v111 = vld [vmem:[#allocation7 + $0x44] sm:$0xf]
    %v112 = vld [vmem:[#allocation7 + $0x48] sm:$0xf]
    %v113 = vld [vmem:[#allocation7 + $0x4c] sm:$0xf]
    %v114 = vld [vmem:[#allocation7 + $0x50] sm:$0xf]
    %v115 = vld [vmem:[#allocation7 + $0x54] sm:$0xf]
    %v116 = vld [vmem:[#allocation7 + $0x58] sm:$0xf]
    %v117 = vld [vmem:[#allocation7 + $0x5c] sm:$0xf]
    %v118 = vld [vmem:[#allocation7 + $0x60] sm:$0xf]
    %v119 = vld [vmem:[#allocation7 + $0x64] sm:$0xf]
    %v120 = vld [vmem:[#allocation7 + $0x68] sm:$0xf]
    %v121 = vld [vmem:[#allocation7 + $0x6c] sm:$0xf]
    %v122 = vld [vmem:[#allocation7 + $0x70] sm:$0xf]
    %v123 = vld [vmem:[#allocation7 + $0x74] sm:$0xf]
    %v124 = vld [vmem:[#allocation7 + $0x78] sm:$0xf]
    %v125 = vld [vmem:[#allocation7 + $0x7c] sm:$0xf]
    %v126 = vld [vmem:[#allocation7 + $0x80] sm:$0xf]
    %v127 = vld [vmem:[#allocation7 + $0x84] sm:$0xf]
    %v128 = vld [vmem:[#allocation7 + $0x88] sm:$0xf]
    %v129 = vld [vmem:[#allocation7 + $0x8c] sm:$0xf]
    %v130 = vld [vmem:[#allocation7 + $0x90] sm:$0xf]
    %v131 = vld [vmem:[#allocation7 + $0x94] sm:$0xf]
    %v132 = vld [vmem:[#allocation7 + $0x98] sm:$0xf]
    %v133 = vld [vmem:[#allocation7 + $0x9c] sm:$0xf]
    %v134 = vld [vmem:[#allocation7 + $0xa0] sm:$0xf]
    %v135 = vld [vmem:[#allocation7 + $0xa4] sm:$0xf]
    %v136 = vld [vmem:[#allocation7 + $0xa8] sm:$0xf]
    %v137 = vld [vmem:[#allocation7 + $0xac] sm:$0xf]
    %v138 = vld [vmem:[#allocation7 + $0xb0] sm:$0xf]
    %v139 = vld [vmem:[#allocation7 + $0xb4] sm:$0xf]
    %v140 = vld [vmem:[#allocation7 + $0xb8] sm:$0xf]
    %v141 = vld [vmem:[#allocation7 + $0xbc] sm:$0xf]
    %v142 = vld [vmem:[#allocation7 + $0xc0] sm:$0xf]
    %v143 = vld [vmem:[#allocation7 + $0xc4] sm:$0xf]
    %v144 = vld [vmem:[#allocation7 + $0xc8] sm:$0xf]
    %v145 = vld [vmem:[#allocation7 + $0xcc] sm:$0xf]
    %v146 = vld [vmem:[#allocation7 + $0xd0] sm:$0xf]
    %v147 = vld [vmem:[#allocation7 + $0xd4] sm:$0xf]
    %v148 = vld [vmem:[#allocation7 + $0xd8] sm:$0xf]
    %v149 = vld [vmem:[#allocation7 + $0xdc] sm:$0xf]
    %v150 = vld [vmem:[#allocation7 + $0xe0] sm:$0xf]
    %v151 = vld [vmem:[#allocation7 + $0xe4] sm:$0xf]
    %v152 = vld [vmem:[#allocation7 + $0xe8] sm:$0xf]
    %v153 = vld [vmem:[#allocation7 + $0xec] sm:$0xf]
    %v154 = vld [vmem:[#allocation7 + $0xf0] sm:$0xf]
    %v155 = vld [vmem:[#allocation7 + $0xf4] sm:$0xf]
    %v156 = vld [vmem:[#allocation7 + $0xf8] sm:$0xf]
    %v157 = vld [vmem:[#allocation7 + $0xfc] sm:$0xf]
    %v158 = vld [vmem:[#allocation7 + $0x100] sm:$0xf]
    %v159 = vld [vmem:[#allocation7 + $0x104] sm:$0xf]
    %v160 = vld [vmem:[#allocation7 + $0x108] sm:$0xf]
    %v161 = vld [vmem:[#allocation7 + $0x10c] sm:$0xf]
    %v162 = vld [vmem:[#allocation7 + $0x110] sm:$0xf]
    %v163 = vld [vmem:[#allocation7 + $0x114] sm:$0xf]
    %v164 = vld [vmem:[#allocation7 + $0x118] sm:$0xf]
    %v165 = vld [vmem:[#allocation7 + $0x11c] sm:$0xf]
    %v166 = vld [vmem:[#allocation7 + $0x120] sm:$0xf]
    %v167 = vld [vmem:[#allocation7 + $0x124] sm:$0xf]
    %v168 = vld [vmem:[#allocation7 + $0x128] sm:$0xf]
    %v169 = vld [vmem:[#allocation7 + $0x12c] sm:$0xf]
    %v170 = vld [vmem:[#allocation7 + $0x130] sm:$0xf]
    %v171 = vld [vmem:[#allocation7 + $0x134] sm:$0xf]
    %v172 = vld [vmem:[#allocation7 + $0x138] sm:$0xf]
    %v173 = vld [vmem:[#allocation7 + $0x13c] sm:$0xf]
    %v174 = vld [vmem:[#allocation7 + $0x140] sm:$0xf]
    %v175 = vld [vmem:[#allocation7 + $0x144] sm:$0xf]
    %v176 = vld [vmem:[#allocation7 + $0x148] sm:$0xf]
    %v177 = vld [vmem:[#allocation7 + $0x14c] sm:$0xf]
    %v178 = vld [vmem:[#allocation7 + $0x150] sm:$0xf]
    %v179 = vld [vmem:[#allocation7 + $0x154] sm:$0xf]
    %v180 = vld [vmem:[#allocation7 + $0x158] sm:$0xf]
    %v181 = vld [vmem:[#allocation7 + $0x15c] sm:$0xf]
    %v182 = vld [vmem:[#allocation7 + $0x160] sm:$0xf]
    %v183 = vld [vmem:[#allocation7 + $0x164] sm:$0xf]
    %v184 = vld [vmem:[#allocation7 + $0x168] sm:$0xf]
    %v185 = vld [vmem:[#allocation7 + $0x16c] sm:$0xf]
    %v186 = vld [vmem:[#allocation7 + $0x170] sm:$0xf]
    %v187 = vld [vmem:[#allocation7 + $0x174] sm:$0xf]
    %v188 = vld [vmem:[#allocation7 + $0x178] sm:$0xf]
    %v189 = vld [vmem:[#allocation7 + $0x17c] sm:$0xf]
    %v190 = vld [vmem:[#allocation7 + $0x180] sm:$0xf]
    %v191 = vld [vmem:[#allocation7 + $0x184] sm:$0xf]
    %v192 = vld [vmem:[#allocation7 + $0x188] sm:$0xf]
    %v193 = vld [vmem:[#allocation7 + $0x18c] sm:$0xf]
    %v194 = vld [vmem:[#allocation7 + $0x190] sm:$0xf]
    %v195 = vld [vmem:[#allocation7 + $0x194] sm:$0xf]
    %v196 = vld [vmem:[#allocation7 + $0x198] sm:$0xf]
    %v197 = vld [vmem:[#allocation7 + $0x19c] sm:$0xf]
    %v198 = vld [vmem:[#allocation7 + $0x1a0] sm:$0xf]
    %v199 = vld [vmem:[#allocation7 + $0x1a4] sm:$0xf]
    %v200 = vld [vmem:[#allocation7 + $0x1a8] sm:$0xf]
    %v201 = vld [vmem:[#allocation7 + $0x1ac] sm:$0xf]
    %v202 = vld [vmem:[#allocation7 + $0x1b0] sm:$0xf]
    %v203 = vld [vmem:[#allocation7 + $0x1b4] sm:$0xf]
    %v204 = vld [vmem:[#allocation7 + $0x1b8] sm:$0xf]
    %v205 = vld [vmem:[#allocation7 + $0x1bc] sm:$0xf]
    %v206 = vld [vmem:[#allocation7 + $0x1c0] sm:$0xf]
    %v207 = vld [vmem:[#allocation7 + $0x1c4] sm:$0xf]
    %v208 = vld [vmem:[#allocation7 + $0x1c8] sm:$0xf]
    %v209 = vld [vmem:[#allocation7 + $0x1cc] sm:$0xf]
    %v210 = vld [vmem:[#allocation7 + $0x1d0] sm:$0xf]
    %v211 = vld [vmem:[#allocation7 + $0x1d4] sm:$0xf]
    %v212 = vld [vmem:[#allocation7 + $0x1d8] sm:$0xf]
    %v213 = vld [vmem:[#allocation7 + $0x1dc] sm:$0xf]
    %v214 = vld [vmem:[#allocation7 + $0x1e0] sm:$0xf]
    %v215 = vld [vmem:[#allocation7 + $0x1e4] sm:$0xf]
    %v216 = vld [vmem:[#allocation7 + $0x1e8] sm:$0xf]
    %v217 = vld [vmem:[#allocation7 + $0x1ec] sm:$0xf]
    %v218 = vld [vmem:[#allocation7 + $0x1f0] sm:$0xf]
    %v219 = vld [vmem:[#allocation7 + $0x1f4] sm:$0xf]
    %v220 = vld [vmem:[#allocation7 + $0x1f8] sm:$0xf]
    %v221 = vld [vmem:[#allocation7 + $0x1fc] sm:$0xf]
    %v222 = vld [vmem:[%s3] sm:$0x1]
    %v224 = vlaneseq
    %v225 = vshrl.u32 %v224, 7
    %v226 = vsub.s32 0, %v225
    %v227 = vrot.slane %v222, %v226
    %v357 = vunpack.c.l.b16 %v94
    %v358 = vunpack.c.l.b16 %v95
    %v359 = vunpack.c.l.b16 %v96
    %v360 = vunpack.c.l.b16 %v97
    %v361 = vunpack.c.l.b16 %v98
    %v362 = vunpack.c.l.b16 %v99
    %v363 = vunpack.c.l.b16 %v100
    %v364 = vunpack.c.l.b16 %v101
    %v365 = vunpack.c.l.b16 %v102
    %v366 = vunpack.c.l.b16 %v103
    %v367 = vunpack.c.l.b16 %v104
    %v368 = vunpack.c.l.b16 %v105
    %v369 = vunpack.c.l.b16 %v106
    %v370 = vunpack.c.l.b16 %v107
    %v371 = vunpack.c.l.b16 %v108
    %v372 = vunpack.c.l.b16 %v109
    %v373 = vunpack.c.l.b16 %v110
    %v374 = vunpack.c.l.b16 %v111
    %v375 = vunpack.c.l.b16 %v112
    %v376 = vunpack.c.l.b16 %v113
    %v377 = vunpack.c.l.b16 %v114
    %v378 = vunpack.c.l.b16 %v115
    %v379 = vunpack.c.l.b16 %v116
    %v380 = vunpack.c.l.b16 %v117
    %v381 = vunpack.c.l.b16 %v118
    %v382 = vunpack.c.l.b16 %v119
    %v383 = vunpack.c.l.b16 %v120
    %v384 = vunpack.c.l.b16 %v121
    %v385 = vunpack.c.l.b16 %v122
    %v386 = vunpack.c.l.b16 %v123
    %v387 = vunpack.c.l.b16 %v124
    %v388 = vunpack.c.l.b16 %v125
    %v389 = vunpack.c.l.b16 %v126
    %v390 = vunpack.c.l.b16 %v127
    %v391 = vunpack.c.l.b16 %v128
    %v392 = vunpack.c.l.b16 %v129
    %v393 = vunpack.c.l.b16 %v130
    %v394 = vunpack.c.l.b16 %v131
    %v395 = vunpack.c.l.b16 %v132
    %v396 = vunpack.c.l.b16 %v133
    %v397 = vunpack.c.l.b16 %v134
    %v398 = vunpack.c.l.b16 %v135
    %v399 = vunpack.c.l.b16 %v136
    %v400 = vunpack.c.l.b16 %v137
    %v401 = vunpack.c.l.b16 %v138
    %v402 = vunpack.c.l.b16 %v139
    %v403 = vunpack.c.l.b16 %v140
    %v404 = vunpack.c.l.b16 %v141
    %v405 = vunpack.c.l.b16 %v142
    %v406 = vunpack.c.l.b16 %v143
    %v407 = vunpack.c.l.b16 %v144
    %v408 = vunpack.c.l.b16 %v145
    %v409 = vunpack.c.l.b16 %v146
    %v410 = vunpack.c.l.b16 %v147
    %v411 = vunpack.c.l.b16 %v148
    %v412 = vunpack.c.l.b16 %v149
    %v413 = vunpack.c.l.b16 %v150
    %v414 = vunpack.c.l.b16 %v151
    %v415 = vunpack.c.l.b16 %v152
    %v416 = vunpack.c.l.b16 %v153
    %v417 = vunpack.c.l.b16 %v154
    %v418 = vunpack.c.l.b16 %v155
    %v419 = vunpack.c.l.b16 %v156
    %v420 = vunpack.c.l.b16 %v157
    %v421 = vunpack.c.l.b16 %v158
    %v422 = vunpack.c.l.b16 %v159
    %v423 = vunpack.c.l.b16 %v160
    %v424 = vunpack.c.l.b16 %v161
    %v425 = vunpack.c.l.b16 %v162
    %v426 = vunpack.c.l.b16 %v163
    %v427 = vunpack.c.l.b16 %v164
    %v428 = vunpack.c.l.b16 %v165
    %v429 = vunpack.c.l.b16 %v166
    %v430 = vunpack.c.l.b16 %v167
    %v431 = vunpack.c.l.b16 %v168
    %v432 = vunpack.c.l.b16 %v169
    %v433 = vunpack.c.l.b16 %v170
    %v434 = vunpack.c.l.b16 %v171
    %v435 = vunpack.c.l.b16 %v172
    %v436 = vunpack.c.l.b16 %v173
    %v437 = vunpack.c.l.b16 %v174
    %v438 = vunpack.c.l.b16 %v175
    %v439 = vunpack.c.l.b16 %v176
    %v440 = vunpack.c.l.b16 %v177
    %v441 = vunpack.c.l.b16 %v178
    %v442 = vunpack.c.l.b16 %v179
    %v443 = vunpack.c.l.b16 %v180
    %v444 = vunpack.c.l.b16 %v181
    %v445 = vunpack.c.l.b16 %v182
    %v446 = vunpack.c.l.b16 %v183
    %v447 = vunpack.c.l.b16 %v184
    %v448 = vunpack.c.l.b16 %v185
    %v449 = vunpack.c.l.b16 %v186
    %v450 = vunpack.c.l.b16 %v187
    %v451 = vunpack.c.l.b16 %v188
    %v452 = vunpack.c.l.b16 %v189
    %v453 = vunpack.c.l.b16 %v190
    %v454 = vunpack.c.l.b16 %v191
    %v455 = vunpack.c.l.b16 %v192
    %v456 = vunpack.c.l.b16 %v193
    %v457 = vunpack.c.l.b16 %v194
    %v458 = vunpack.c.l.b16 %v195
    %v459 = vunpack.c.l.b16 %v196
    %v460 = vunpack.c.l.b16 %v197
    %v461 = vunpack.c.l.b16 %v198
    %v462 = vunpack.c.l.b16 %v199
    %v463 = vunpack.c.l.b16 %v200
    %v464 = vunpack.c.l.b16 %v201
    %v465 = vunpack.c.l.b16 %v202
    %v466 = vunpack.c.l.b16 %v203
    %v467 = vunpack.c.l.b16 %v204
    %v468 = vunpack.c.l.b16 %v205
    %v469 = vunpack.c.l.b16 %v206
    %v470 = vunpack.c.l.b16 %v207
    %v471 = vunpack.c.l.b16 %v208
    %v472 = vunpack.c.l.b16 %v209
    %v473 = vunpack.c.l.b16 %v210
    %v474 = vunpack.c.l.b16 %v211
    %v475 = vunpack.c.l.b16 %v212
    %v476 = vunpack.c.l.b16 %v213
    %v477 = vunpack.c.l.b16 %v214
    %v478 = vunpack.c.l.b16 %v215
    %v479 = vunpack.c.l.b16 %v216
    %v480 = vunpack.c.l.b16 %v217
    %v481 = vunpack.c.l.b16 %v218
    %v482 = vunpack.c.l.b16 %v219
    %v483 = vunpack.c.l.b16 %v220
    %v484 = vunpack.c.l.b16 %v221
    %v485 = vpack.c.b16 %v358, %v357
    %v486 = vpack.c.b16 %v360, %v359
    %v487 = vpack.c.b16 %v362, %v361
    %v488 = vpack.c.b16 %v364, %v363
    %v489 = vpack.c.b16 %v366, %v365
    %v490 = vpack.c.b16 %v368, %v367
    %v491 = vpack.c.b16 %v370, %v369
    %v492 = vpack.c.b16 %v372, %v371
    %v493 = vpack.c.b16 %v374, %v373
    %v494 = vpack.c.b16 %v376, %v375
    %v495 = vpack.c.b16 %v378, %v377
    %v496 = vpack.c.b16 %v380, %v379
    %v497 = vpack.c.b16 %v382, %v381
    %v498 = vpack.c.b16 %v384, %v383
    %v499 = vpack.c.b16 %v386, %v385
    %v500 = vpack.c.b16 %v388, %v387
    %v501 = vpack.c.b16 %v390, %v389
    %v502 = vpack.c.b16 %v392, %v391
    %v503 = vpack.c.b16 %v394, %v393
    %v504 = vpack.c.b16 %v396, %v395
    %v505 = vpack.c.b16 %v398, %v397
    %v506 = vpack.c.b16 %v400, %v399
    %v507 = vpack.c.b16 %v402, %v401
    %v508 = vpack.c.b16 %v404, %v403
    %v509 = vpack.c.b16 %v406, %v405
    %v510 = vpack.c.b16 %v408, %v407
    %v511 = vpack.c.b16 %v410, %v409
    %v512 = vpack.c.b16 %v412, %v411
    %v513 = vpack.c.b16 %v414, %v413
    %v514 = vpack.c.b16 %v416, %v415
    %v515 = vpack.c.b16 %v418, %v417
    %v516 = vpack.c.b16 %v420, %v419
    %v517 = vpack.c.b16 %v422, %v421
    %v518 = vpack.c.b16 %v424, %v423
    %v519 = vpack.c.b16 %v426, %v425
    %v520 = vpack.c.b16 %v428, %v427
    %v521 = vpack.c.b16 %v430, %v429
    %v522 = vpack.c.b16 %v432, %v431
    %v523 = vpack.c.b16 %v434, %v433
    %v524 = vpack.c.b16 %v436, %v435
    %v525 = vpack.c.b16 %v438, %v437
    %v526 = vpack.c.b16 %v440, %v439
    %v527 = vpack.c.b16 %v442, %v441
    %v528 = vpack.c.b16 %v444, %v443
    %v529 = vpack.c.b16 %v446, %v445
    %v530 = vpack.c.b16 %v448, %v447
    %v531 = vpack.c.b16 %v450, %v449
    %v532 = vpack.c.b16 %v452, %v451
    %v533 = vpack.c.b16 %v454, %v453
    %v534 = vpack.c.b16 %v456, %v455
    %v535 = vpack.c.b16 %v458, %v457
    %v536 = vpack.c.b16 %v460, %v459
    %v537 = vpack.c.b16 %v462, %v461
    %v538 = vpack.c.b16 %v464, %v463
    %v539 = vpack.c.b16 %v466, %v465
    %v540 = vpack.c.b16 %v468, %v467
    %v541 = vpack.c.b16 %v470, %v469
    %v542 = vpack.c.b16 %v472, %v471
    %v543 = vpack.c.b16 %v474, %v473
    %v544 = vpack.c.b16 %v476, %v475
    %v545 = vpack.c.b16 %v478, %v477
    %v546 = vpack.c.b16 %v480, %v479
    %v547 = vpack.c.b16 %v482, %v481
    %v548 = vpack.c.b16 %v484, %v483
    %613 = vmatprep.subr.bf16.mxu0 0
    %614 = vmatpush1.bf16.msra.mxu0 %v492
    %615 = vmatprep.subr.bf16.mxu0 0
    %616 = vmatpush1.bf16.msra.mxu0 %v491
    %617 = vmatprep.subr.bf16.mxu0 0
    %618 = vmatpush1.bf16.msra.mxu0 %v490
    %619 = vmatprep.subr.bf16.mxu0 0
    %620 = vmatpush1.bf16.msra.mxu0 %v489
    %621 = vmatprep.subr.bf16.mxu0 0
    %622 = vmatpush1.bf16.msra.mxu0 %v488
    %623 = vmatprep.subr.bf16.mxu0 0
    %624 = vmatpush1.bf16.msra.mxu0 %v487
    %625 = vmatprep.subr.bf16.mxu0 0
    %626 = vmatpush1.bf16.msra.mxu0 %v486
    %627 = vmatprep.subr.bf16.mxu0 0
    %628 = vmatpush1.bf16.msra.mxu0 %v485
    %629 = vmatprep.subr.bf16.mxu0 0
    %630 = vmatpush2.bf16.msra.mxu0 %v500
    %631 = vmatprep.subr.bf16.mxu0 0
    %632 = vmatpush2.bf16.msra.mxu0 %v499
    %633 = vmatprep.subr.bf16.mxu0 0
    %634 = vmatpush2.bf16.msra.mxu0 %v498
    %635 = vmatprep.subr.bf16.mxu0 0
    %636 = vmatpush2.bf16.msra.mxu0 %v497
    %637 = vmatprep.subr.bf16.mxu0 0
    %638 = vmatpush2.bf16.msra.mxu0 %v496
    %639 = vmatprep.subr.bf16.mxu0 0
    %640 = vmatpush2.bf16.msra.mxu0 %v495
    %641 = vmatprep.subr.bf16.mxu0 0
    %642 = vmatpush2.bf16.msra.mxu0 %v494
    %643 = vmatprep.subr.bf16.mxu0 0
    %644 = vmatpush2.bf16.msra.mxu0 %v493
    %645 = vmatprep.mubr.bf16.mxu0 %v87
    %646 = vmatmul.mubr.bf16.gmra.mxu0 %v86
    %v647 = vpop.f32.mrf.mxu0
    %v648 = vadd.f32 %v227, %v647
    %v649 = vpop.f32.mrf.mxu0
    %v650 = vpop.f32.mrf.mxu0
    %v651 = vpop.f32.mrf.mxu0
    %652 = vdwg.mxu0
    %653 = vmatprep.subr.bf16.mxu0 0
    %654 = vmatpush1.bf16.msra.mxu0 %v508
    %655 = vmatprep.subr.bf16.mxu0 0
    %656 = vmatpush1.bf16.msra.mxu0 %v507
    %657 = vmatprep.subr.bf16.mxu0 0
    %658 = vmatpush1.bf16.msra.mxu0 %v506
    %659 = vmatprep.subr.bf16.mxu0 0
    %660 = vmatpush1.bf16.msra.mxu0 %v505
    %661 = vmatprep.subr.bf16.mxu0 0
    %662 = vmatpush1.bf16.msra.mxu0 %v504
    %663 = vmatprep.subr.bf16.mxu0 0
    %664 = vmatpush1.bf16.msra.mxu0 %v503
    %665 = vmatprep.subr.bf16.mxu0 0
    %666 = vmatpush1.bf16.msra.mxu0 %v502
    %667 = vmatprep.subr.bf16.mxu0 0
    %668 = vmatpush1.bf16.msra.mxu0 %v501
    %669 = vmatprep.subr.bf16.mxu0 0
    %670 = vmatpush2.bf16.msra.mxu0 %v516
    %671 = vmatprep.subr.bf16.mxu0 0
    %672 = vmatpush2.bf16.msra.mxu0 %v515
    %673 = vmatprep.subr.bf16.mxu0 0
    %674 = vmatpush2.bf16.msra.mxu0 %v514
    %675 = vmatprep.subr.bf16.mxu0 0
    %676 = vmatpush2.bf16.msra.mxu0 %v513
    %677 = vmatprep.subr.bf16.mxu0 0
    %678 = vmatpush2.bf16.msra.mxu0 %v512
    %679 = vmatprep.subr.bf16.mxu0 0
    %680 = vmatpush2.bf16.msra.mxu0 %v511
    %681 = vmatprep.subr.bf16.mxu0 0
    %682 = vmatpush2.bf16.msra.mxu0 %v510
    %683 = vmatprep.subr.bf16.mxu0 0
    %684 = vmatpush2.bf16.msra.mxu0 %v509
    %685 = vmatprep.mubr.bf16.mxu0 %v89
    %686 = vmatmul.mubr.bf16.gmra.mxu0 %v88
    %v687 = vpop.f32.mrf.mxu0
    %v688 = vadd.f32 %v648, %v687
    %v689 = vpop.f32.mrf.mxu0
    %v690 = vpop.f32.mrf.mxu0
    %v691 = vpop.f32.mrf.mxu0
    %692 = vdwg.mxu0
    %693 = vmatprep.subr.bf16.mxu0 0
    %694 = vmatpush1.bf16.msra.mxu0 %v524
    %695 = vmatprep.subr.bf16.mxu0 0
    %696 = vmatpush1.bf16.msra.mxu0 %v523
    %697 = vmatprep.subr.bf16.mxu0 0
    %698 = vmatpush1.bf16.msra.mxu0 %v522
    %699 = vmatprep.subr.bf16.mxu0 0
    %700 = vmatpush1.bf16.msra.mxu0 %v521
    %701 = vmatprep.subr.bf16.mxu0 0
    %702 = vmatpush1.bf16.msra.mxu0 %v520
    %703 = vmatprep.subr.bf16.mxu0 0
    %704 = vmatpush1.bf16.msra.mxu0 %v519
    %705 = vmatprep.subr.bf16.mxu0 0
    %706 = vmatpush1.bf16.msra.mxu0 %v518
    %707 = vmatprep.subr.bf16.mxu0 0
    %708 = vmatpush1.bf16.msra.mxu0 %v517
    %709 = vmatprep.subr.bf16.mxu0 0
    %710 = vmatpush2.bf16.msra.mxu0 %v532
    %711 = vmatprep.subr.bf16.mxu0 0
    %712 = vmatpush2.bf16.msra.mxu0 %v531
    %713 = vmatprep.subr.bf16.mxu0 0
    %714 = vmatpush2.bf16.msra.mxu0 %v530
    %715 = vmatprep.subr.bf16.mxu0 0
    %716 = vmatpush2.bf16.msra.mxu0 %v529
    %717 = vmatprep.subr.bf16.mxu0 0
    %718 = vmatpush2.bf16.msra.mxu0 %v528
    %719 = vmatprep.subr.bf16.mxu0 0
    %720 = vmatpush2.bf16.msra.mxu0 %v527
    %721 = vmatprep.subr.bf16.mxu0 0
    %722 = vmatpush2.bf16.msra.mxu0 %v526
    %723 = vmatprep.subr.bf16.mxu0 0
    %724 = vmatpush2.bf16.msra.mxu0 %v525
    %725 = vmatprep.mubr.bf16.mxu0 %v91
    %726 = vmatmul.mubr.bf16.gmra.mxu0 %v90
    %v727 = vpop.f32.mrf.mxu0
    %v728 = vadd.f32 %v688, %v727
    %v729 = vpop.f32.mrf.mxu0
    %v730 = vpop.f32.mrf.mxu0
    %v731 = vpop.f32.mrf.mxu0
    %732 = vdwg.mxu0
    %733 = vmatprep.subr.bf16.mxu0 0
    %734 = vmatpush1.bf16.msra.mxu0 %v540
    %735 = vmatprep.subr.bf16.mxu0 0
    %736 = vmatpush1.bf16.msra.mxu0 %v539
    %737 = vmatprep.subr.bf16.mxu0 0
    %738 = vmatpush1.bf16.msra.mxu0 %v538
    %739 = vmatprep.subr.bf16.mxu0 0
    %740 = vmatpush1.bf16.msra.mxu0 %v537
    %741 = vmatprep.subr.bf16.mxu0 0
    %742 = vmatpush1.bf16.msra.mxu0 %v536
    %743 = vmatprep.subr.bf16.mxu0 0
    %744 = vmatpush1.bf16.msra.mxu0 %v535
    %745 = vmatprep.subr.bf16.mxu0 0
    %746 = vmatpush1.bf16.msra.mxu0 %v534
    %747 = vmatprep.subr.bf16.mxu0 0
    %748 = vmatpush1.bf16.msra.mxu0 %v533
    %749 = vmatprep.subr.bf16.mxu0 0
    %750 = vmatpush2.bf16.msra.mxu0 %v548
    %751 = vmatprep.subr.bf16.mxu0 0
    %752 = vmatpush2.bf16.msra.mxu0 %v547
    %753 = vmatprep.subr.bf16.mxu0 0
    %754 = vmatpush2.bf16.msra.mxu0 %v546
    %755 = vmatprep.subr.bf16.mxu0 0
    %756 = vmatpush2.bf16.msra.mxu0 %v545
    %757 = vmatprep.subr.bf16.mxu0 0
    %758 = vmatpush2.bf16.msra.mxu0 %v544
    %759 = vmatprep.subr.bf16.mxu0 0
    %760 = vmatpush2.bf16.msra.mxu0 %v543
    %761 = vmatprep.subr.bf16.mxu0 0
    %762 = vmatpush2.bf16.msra.mxu0 %v542
    %763 = vmatprep.subr.bf16.mxu0 0
    %764 = vmatpush2.bf16.msra.mxu0 %v541
    %765 = vmatprep.mubr.bf16.mxu0 %v93
    %766 = vmatmul.mubr.bf16.gmra.mxu0 %v92
    %v767 = vpop.f32.mrf.mxu0
    %v768 = vadd.f32 %v728, %v767
    %v769 = vpop.f32.mrf.mxu0
    %v770 = vpop.f32.mrf.mxu0
    %v771 = vpop.f32.mrf.mxu0
    %772 = vdwg.mxu0
    %v773 = vmax.f32 %v768, 0.0
    %v774 = vld [vmem:[%s4] sm:$0x1]
    %v776 = vlaneseq
    %v777 = vshrl.u32 %v776, 7
    %v778 = vsub.s32 0, %v777
    %v779 = vrot.slane %v774, %v778
    %v781 = vmul.f32 %v773, %v779
    %782 = vadd.xlane.f32.xlu0 %v781
    %v783 = vpop.xlane.xlu0 %782
    %s784 = sld [smem:[#allocation2]]
    %v785 = vstv %s784
    %v786 = vadd.f32 %v783, %v785
    %v787 = vxor.u32 %v786, 2147483648
    %v788 = vmul.f32 %v787, 1.442695
    %v789 = vpow.pop %v788
    %v790 = vadd.f32 %v789, 1.0
    %v791 = vrcp.pop %v790
    %v792 = vmul.f32 1.0, %v791
    %vm793 = vcmask 7168
    %794 = vst.msk [vmem:[%s6] sm:$0xff] %vm793, %v792
    // Predicated region
    $region38: #{tpu_custom_call.1} parent=1 // pred_check
      _
    $region39: #{tpu_custom_call.1} parent=1 // pred_check_branch
      %796 = sbr.rel (0) target = $region41
    $region40: #{tpu_custom_call.1} parent=1 // pred_region
      _
    $region41: #{tpu_custom_call.1} parent=1 // pred_fallthru
      _
    // Predicated region
    $region42: #{tpu_custom_call.1} parent=1 // pred_check
      _
    $region43: #{tpu_custom_call.1} parent=1 // pred_check_branch
      %798 = sbr.rel (0) target = $region45
    $region44: #{tpu_custom_call.1} parent=1 // pred_region
      _
    $region45: #{tpu_custom_call.1} parent=1 // pred_fallthru
      _
    %799 = vsyncpa [#allocation4], 1
    %800 = vsyncpa [#allocation6], 1

</llo_original>
